<compile_context>
chip_gen: v7x
topology: tpu7x:2x2x1
jax: 0.10.0
libtpu: 0.0.40
codegen_flags: <defaults>
</compile_context>

<pallas_src>
import functools

import jax
import jax.numpy as jnp
from jax.experimental import pallas as pl
from jax.experimental.pallas import tpu as pltpu

_IGNORE_INDEX = -100  # torch.nn.CrossEntropyLoss default


def _round_up(x, m):
    return ((x + m - 1) // m) * m


def _ce_kernel(logits_ref, labels_ref, nll_ref, m_acc, s_acc, t_acc, *,
               n_rows, n_cls, tm, tc, n_class_tiles, ignore_index):
    """Online cross-entropy over one (tm, tc) logits block.

    VMEM scratch accumulators (persistent across the class grid axis):
      m_acc: running row max, s_acc: running sum(exp(x - m)), t_acc: x[label].
    """
    i = pl.program_id(0)
    j = pl.program_id(1)

    @pl.when(j == 0)
    def _init():
        m_acc[...] = jnp.full_like(m_acc, -jnp.inf)
        s_acc[...] = jnp.zeros_like(s_acc)
        t_acc[...] = jnp.zeros_like(t_acc)

    x = logits_ref[...]                               # (tm, tc), native dtype
    labels = labels_ref[...]                          # (tm, 1) int32
    col = j * tc + jax.lax.broadcasted_iota(jnp.int32, (tm, tc), 1)

    if n_class_tiles > 1:
        # Partial last class tile: mask columns past the true vocab size.
        x = jnp.where(col < n_cls, x, -jnp.inf)

    # Target logit gathered from the pre-shift logits (one-hot select; no
    # dynamic gather on TPU).  Keeps (x - max) single-use below.
    t_acc[...] += jnp.sum(
        jnp.where(col == labels, x, 0).astype(jnp.float32),
        axis=-1, keepdims=True)

    # Online logsumexp: block max in the native dtype (bf16 on v6e/v7x VPUs),
    # rescale + exp accumulation in f32 for numerical stability.
    m_blk = jnp.max(x, axis=-1, keepdims=True).astype(jnp.float32)    # (tm, 1)
    m_new = jnp.maximum(m_acc[...], m_blk)
    alpha = jnp.exp(m_acc[...] - m_new)
    xm = x.astype(jnp.float32) - m_new                # streams into exp->sum only
    s_acc[...] = alpha * s_acc[...] + jnp.sum(jnp.exp(xm), axis=-1, keepdims=True)
    m_acc[...] = m_new

    @pl.when(j == n_class_tiles - 1)
    def _finalize():
        per_row = m_acc[...] + jnp.log(s_acc[...]) - t_acc[...]
        row = i * tm + jax.lax.broadcasted_iota(jnp.int32, (tm, 1), 0)
        keep = (row < n_rows) & (labels != ignore_index)
        nll_ref[...] = jnp.where(keep, per_row, 0.0)


def _pick_tiles(n_rows, n_cls, itemsize, pack):
    """Pick (row_tile, class_tile, vmem_limit_bytes) for the current TPU gen."""
    try:
        vmem_cap = int(pltpu.get_tpu_info().vmem_capacity_bytes)
    except Exception:  # be conservative: v7x has the smallest VMEM (64 MiB)
        vmem_cap = 64 * 1024 * 1024
    vmem_limit = (vmem_cap * 3) // 4          # ~75% of physical: headroom vs spills
    budget = vmem_limit // 2                  # modeled bytes for one (tm, tc) step
    # Per block element: 2 double-buffered input copies + ~3 full-tile f32
    # intermediates (exp stream, iota/compare, one-hot select).
    bytes_per_elem = 2 * itemsize + 12

    # Class tile: whole vocab if even a minimal (pack-row) tile fits the
    # budget, else the largest 128-lane multiple that does (online logsumexp
    # over the class grid axis kicks in for huge vocabularies).
    if pack * n_cls * bytes_per_elem <= budget:
        tc = n_cls
    else:
        tc = max(128, (budget // (pack * bytes_per_elem)) // 128 * 128)

    # Row tile: aim for a multi-MiB logits block (~85%+ of HBM roofline),
    # bounded by the VMEM budget; no arbitrary row cap.
    tm_vmem = budget // (tc * bytes_per_elem)
    tm_target = max((4 * 1024 * 1024) // (tc * itemsize), pack)
    tm = min(tm_vmem, tm_target)
    # Keep >= 2 row tiles so both TensorCores get work on dual-core chips (v7x).
    tm = min(tm, _round_up(pl.cdiv(n_rows, 2), pack))
    tm = max(pack, (tm // pack) * pack)       # dtype sublane packing (8/16/32)
    return tm, tc, vmem_limit


def per_row_nll(logits, labels, *, ignore_index=_IGNORE_INDEX,
                force_tm=None, force_tc=None):
    """Per-sample CE: logsumexp(logits_i) - logits_i[label_i]; 0 for ignored rows."""
    n_rows, n_cls = logits.shape
    itemsize = jnp.dtype(logits.dtype).itemsize
    pack = max(8, 32 // itemsize)             # sublanes per packed vreg row
    tm, tc, vmem_limit = _pick_tiles(n_rows, n_cls, itemsize, pack)
    if force_tm is not None:
        tm = force_tm
    if force_tc is not None:
        tc = force_tc
    assert tm % 8 == 0, tm
    assert tc == n_cls or tc % 128 == 0, tc

    n_row_tiles = pl.cdiv(n_rows, tm)
    n_class_tiles = pl.cdiv(n_cls, tc)
    labels2d = labels.astype(jnp.int32).reshape(n_rows, 1)

    kernel = functools.partial(
        _ce_kernel, n_rows=n_rows, n_cls=n_cls, tm=tm, tc=tc,
        n_class_tiles=n_class_tiles, ignore_index=ignore_index)

    nll = pl.pallas_call(
        kernel,
        out_shape=jax.ShapeDtypeStruct((n_rows, 1), jnp.float32),
        grid_spec=pltpu.PrefetchScalarGridSpec(
            num_scalar_prefetch=0,
            grid=(n_row_tiles, n_class_tiles),        # reduction (class) axis last
            in_specs=[
                pl.BlockSpec((tm, tc), lambda i, j: (i, j)),
                pl.BlockSpec((tm, 1), lambda i, j: (i, 0)),   # resident across j
            ],
            out_specs=pl.BlockSpec((tm, 1), lambda i, j: (i, 0)),
            scratch_shapes=[pltpu.VMEM((tm, 1), jnp.float32)] * 3,
        ),
        compiler_params=pltpu.CompilerParams(
            dimension_semantics=("parallel", "arbitrary"),
            vmem_limit_bytes=int(vmem_limit),
        ),
    )(logits, labels2d)
    return nll[:, 0]


class CustomCELoss:
    """Mirror of the PyTorch module: forward(batch, model_out) -> loss."""

    def __init__(self, reduction="mean"):
        assert reduction in ("mean", "sum", "none"), reduction
        self.reduction = reduction

    def __call__(self, batch, model_out):
        labels = batch["labels"]
        nll = per_row_nll(model_out["logits"], labels)
        if self.reduction == "none":
            return nll
        total = jnp.sum(nll)
        if self.reduction == "sum":
            return total
        # torch 'mean': sum over non-ignored rows / number of non-ignored rows.
        n_valid = jnp.sum((labels != _IGNORE_INDEX).astype(jnp.float32))
        return total / n_valid


if __name__ == "__main__":
    key = jax.random.PRNGKey(0)
    k1, k2, k3, k4 = jax.random.split(key, 4)

    # Case 1: small f32 problem (single class tile, auto-sized row tiles).
    N, C = 16, 32
    logits = jax.random.normal(k1, (N, C), dtype=jnp.float32)
    labels = jax.random.randint(k2, (N,), 0, C, dtype=jnp.int32)
    loss = CustomCELoss(reduction="mean")({"labels": labels}, {"logits": logits})
    loss = jax.block_until_ready(loss)
    lse = jax.nn.logsumexp(logits, axis=-1)
    ref = jnp.mean(lse - logits[jnp.arange(N), labels])
    assert jnp.allclose(loss, ref, atol=1e-5, rtol=1e-5), (loss, ref)

    # Case 2: bf16 logits, vocab not a multiple of 128, forced class tiling so
    # the online-logsumexp accumulators and column masking are exercised.
    N2, C2 = 24, 320
    logits2 = jax.random.normal(k3, (N2, C2), dtype=jnp.float32).astype(jnp.bfloat16)
    labels2 = jax.random.randint(k4, (N2,), 0, C2, dtype=jnp.int32)
    nll2 = per_row_nll(logits2, labels2, force_tm=16, force_tc=128)
    nll2 = jax.block_until_ready(nll2)
    l2f = logits2.astype(jnp.float32)
    ref2 = jax.nn.logsumexp(l2f, axis=-1) - l2f[jnp.arange(N2), labels2]
    assert jnp.allclose(nll2, ref2, atol=1e-4, rtol=1e-4), (nll2, ref2)

    print("KERNEL_OK")
</pallas_src>

<mosaic_0001>
module attributes {stable_mosaic.version = 11 : i64} {
  func.func @_ce_kernel(%arg0: i32, %arg1: i32, %arg2: memref<8x32xf32, #tpu.memory_space<vmem>>, %arg3: memref<8x1xi32, #tpu.memory_space<vmem>>, %arg4: memref<8x1xf32, #tpu.memory_space<vmem>>, %arg5: memref<8x1xf32, #tpu.memory_space<vmem>>, %arg6: memref<8x1xf32, #tpu.memory_space<vmem>>, %arg7: memref<8x1xf32, #tpu.memory_space<vmem>>) attributes {dimension_semantics = [#tpu.dimension_semantics<parallel>, #tpu.dimension_semantics<arbitrary>], iteration_bounds = array<i64: 2, 1>, scalar_prefetch = 0 : i64, scratch_operands = 3 : i64, tpu.core_type = #tpu.core_type<tc>, window_params = [{transform_indices = @transform_0, window_bounds = array<i64: 8, 32>}, {transform_indices = @transform_1, window_bounds = array<i64: 8, 1>}, {transform_indices = @transform_2, window_bounds = array<i64: 8, 1>}]} {
    %c0_i32 = arith.constant 0 : i32
    %0 = arith.cmpi eq, %arg1, %c0_i32 : i32
    %1 = arith.extui %0 : i1 to i32
    %c0_i32_0 = arith.constant 0 : i32
    %2 = arith.cmpi ne, %1, %c0_i32_0 : i32
    scf.if %2 {
      %cst_23 = arith.constant 0xFF800000 : f32
      %39 = vector.broadcast %cst_23 : f32 to vector<8x1xf32>
      %c0_24 = arith.constant 0 : index
      %c0_25 = arith.constant 0 : index
      %40 = vector.load %arg5[%c0_24, %c0_25] : memref<8x1xf32, #tpu.memory_space<vmem>>, vector<8x1xf32>
      tpu.vector_store %arg5[%c0_24, %c0_25], %39 {strides = array<i32>} : memref<8x1xf32, #tpu.memory_space<vmem>>, vector<8x1xf32>,
      %cst_26 = arith.constant 0.000000e+00 : f32
      %41 = vector.broadcast %cst_26 : f32 to vector<8x1xf32>
      %c0_27 = arith.constant 0 : index
      %c0_28 = arith.constant 0 : index
      %42 = vector.load %arg6[%c0_27, %c0_28] : memref<8x1xf32, #tpu.memory_space<vmem>>, vector<8x1xf32>
      tpu.vector_store %arg6[%c0_27, %c0_28], %41 {strides = array<i32>} : memref<8x1xf32, #tpu.memory_space<vmem>>, vector<8x1xf32>,
      %cst_29 = arith.constant 0.000000e+00 : f32
      %43 = vector.broadcast %cst_29 : f32 to vector<8x1xf32>
      %c0_30 = arith.constant 0 : index
      %c0_31 = arith.constant 0 : index
      %44 = vector.load %arg7[%c0_30, %c0_31] : memref<8x1xf32, #tpu.memory_space<vmem>>, vector<8x1xf32>
      tpu.vector_store %arg7[%c0_30, %c0_31], %43 {strides = array<i32>} : memref<8x1xf32, #tpu.memory_space<vmem>>, vector<8x1xf32>,
    } else {
    }
    %c0 = arith.constant 0 : index
    %c0_1 = arith.constant 0 : index
    %3 = vector.load %arg2[%c0, %c0_1] : memref<8x32xf32, #tpu.memory_space<vmem>>, vector<8x32xf32>
    %c0_2 = arith.constant 0 : index
    %c0_3 = arith.constant 0 : index
    %4 = vector.load %arg3[%c0_2, %c0_3] : memref<8x1xi32, #tpu.memory_space<vmem>>, vector<8x1xi32>
    %c32_i32 = arith.constant 32 : i32
    %5 = arith.muli %arg1, %c32_i32 : i32
    %6 = tpu.iota {dimensions = array<i32: 1>} : vector<8x32xi32>
    %7 = vector.broadcast %5 : i32 to vector<8x32xi32>
    %8 = arith.addi %7, %6 : vector<8x32xi32>
    %c0_4 = arith.constant 0 : index
    %c0_5 = arith.constant 0 : index
    %9 = vector.load %arg7[%c0_4, %c0_5] : memref<8x1xf32, #tpu.memory_space<vmem>>, vector<8x1xf32>
    %10 = vector.broadcast %4 : vector<8x1xi32> to vector<8x32xi32>
    %11 = arith.cmpi eq, %8, %10 : vector<8x32xi32>
    %c0_i32_6 = arith.constant 0 : i32
    %12 = arith.sitofp %c0_i32_6 : i32 to f32
    %13 = vector.broadcast %12 : f32 to vector<8x32xf32>
    %14 = arith.select %11, %3, %13 : vector<8x32xi1>, vector<8x32xf32>
    %cst = arith.constant dense<0.000000e+00> : vector<8xf32>
    %15 = vector.multi_reduction <add>, %14, %cst [1] : vector<8x32xf32> to vector<8xf32>
    %16 = vector.shape_cast %15 : vector<8xf32> to vector<8x1xf32>
    %17 = arith.addf %9, %16 : vector<8x1xf32>
    %c0_7 = arith.constant 0 : index
    %c0_8 = arith.constant 0 : index
    %18 = vector.load %arg7[%c0_7, %c0_8] : memref<8x1xf32, #tpu.memory_space<vmem>>, vector<8x1xf32>
    tpu.vector_store %arg7[%c0_7, %c0_8], %17 {strides = array<i32>} : memref<8x1xf32, #tpu.memory_space<vmem>>, vector<8x1xf32>,
    %cst_9 = arith.constant dense<0xFF800000> : vector<8xf32>
    %19 = vector.multi_reduction <maximumf>, %3, %cst_9 [1] : vector<8x32xf32> to vector<8xf32>
    %20 = vector.shape_cast %19 : vector<8xf32> to vector<8x1xf32>
    %c0_10 = arith.constant 0 : index
    %c0_11 = arith.constant 0 : index
    %21 = vector.load %arg5[%c0_10, %c0_11] : memref<8x1xf32, #tpu.memory_space<vmem>>, vector<8x1xf32>
    %22 = arith.maximumf %21, %20 : vector<8x1xf32>
    %c0_12 = arith.constant 0 : index
    %c0_13 = arith.constant 0 : index
    %23 = vector.load %arg5[%c0_12, %c0_13] : memref<8x1xf32, #tpu.memory_space<vmem>>, vector<8x1xf32>
    %24 = arith.subf %23, %22 : vector<8x1xf32>
    %25 = math.exp %24 : vector<8x1xf32>
    %26 = vector.broadcast %22 : vector<8x1xf32> to vector<8x32xf32>
    %27 = arith.subf %3, %26 : vector<8x32xf32>
    %c0_14 = arith.constant 0 : index
    %c0_15 = arith.constant 0 : index
    %28 = vector.load %arg6[%c0_14, %c0_15] : memref<8x1xf32, #tpu.memory_space<vmem>>, vector<8x1xf32>
    %29 = arith.mulf %25, %28 : vector<8x1xf32>
    %30 = math.exp %27 : vector<8x32xf32>
    %cst_16 = arith.constant dense<0.000000e+00> : vector<8xf32>
    %31 = vector.multi_reduction <add>, %30, %cst_16 [1] : vector<8x32xf32> to vector<8xf32>
    %32 = vector.shape_cast %31 : vector<8xf32> to vector<8x1xf32>
    %33 = arith.addf %29, %32 : vector<8x1xf32>
    %c0_17 = arith.constant 0 : index
    %c0_18 = arith.constant 0 : index
    %34 = vector.load %arg6[%c0_17, %c0_18] : memref<8x1xf32, #tpu.memory_space<vmem>>, vector<8x1xf32>
    tpu.vector_store %arg6[%c0_17, %c0_18], %33 {strides = array<i32>} : memref<8x1xf32, #tpu.memory_space<vmem>>, vector<8x1xf32>,
    %c0_19 = arith.constant 0 : index
    %c0_20 = arith.constant 0 : index
    %35 = vector.load %arg5[%c0_19, %c0_20] : memref<8x1xf32, #tpu.memory_space<vmem>>, vector<8x1xf32>
    tpu.vector_store %arg5[%c0_19, %c0_20], %22 {strides = array<i32>} : memref<8x1xf32, #tpu.memory_space<vmem>>, vector<8x1xf32>,
    %c0_i32_21 = arith.constant 0 : i32
    %36 = arith.cmpi eq, %arg1, %c0_i32_21 : i32
    %37 = arith.extui %36 : i1 to i32
    %c0_i32_22 = arith.constant 0 : i32
    %38 = arith.cmpi ne, %37, %c0_i32_22 : i32
    scf.if %38 {
      %c0_23 = arith.constant 0 : index
      %c0_24 = arith.constant 0 : index
      %39 = vector.load %arg5[%c0_23, %c0_24] : memref<8x1xf32, #tpu.memory_space<vmem>>, vector<8x1xf32>
      %c0_25 = arith.constant 0 : index
      %c0_26 = arith.constant 0 : index
      %40 = vector.load %arg6[%c0_25, %c0_26] : memref<8x1xf32, #tpu.memory_space<vmem>>, vector<8x1xf32>
      %41 = math.log %40 : vector<8x1xf32>
      %42 = arith.addf %39, %41 : vector<8x1xf32>
      %c0_27 = arith.constant 0 : index
      %c0_28 = arith.constant 0 : index
      %43 = vector.load %arg7[%c0_27, %c0_28] : memref<8x1xf32, #tpu.memory_space<vmem>>, vector<8x1xf32>
      %44 = arith.subf %42, %43 : vector<8x1xf32>
      %c8_i32 = arith.constant 8 : i32
      %45 = arith.muli %arg0, %c8_i32 : i32
      %46 = tpu.iota {dimensions = array<i32: 0>} : vector<8x1xi32>
      %47 = vector.broadcast %45 : i32 to vector<8x1xi32>
      %48 = arith.addi %47, %46 : vector<8x1xi32>
      %c16_i32 = arith.constant 16 : i32
      %49 = vector.broadcast %c16_i32 : i32 to vector<8x1xi32>
      %50 = arith.cmpi slt, %48, %49 : vector<8x1xi32>
      %c-100_i32 = arith.constant -100 : i32
      %51 = vector.broadcast %c-100_i32 : i32 to vector<8x1xi32>
      %52 = arith.cmpi ne, %4, %51 : vector<8x1xi32>
      %53 = arith.andi %50, %52 : vector<8x1xi1>
      %cst_29 = arith.constant 0.000000e+00 : f32
      %54 = vector.broadcast %cst_29 : f32 to vector<8x1xf32>
      %55 = arith.select %53, %44, %54 : vector<8x1xi1>, vector<8x1xf32>
      %c0_30 = arith.constant 0 : index
      %c0_31 = arith.constant 0 : index
      %56 = vector.load %arg4[%c0_30, %c0_31] : memref<8x1xf32, #tpu.memory_space<vmem>>, vector<8x1xf32>
      tpu.vector_store %arg4[%c0_30, %c0_31], %55 {strides = array<i32>} : memref<8x1xf32, #tpu.memory_space<vmem>>, vector<8x1xf32>,
    } else {
    }
    return
  }
  func.func @transform_0(%arg0: i32, %arg1: i32) -> (i32, i32) {
    %c0_i32 = arith.constant 0 : i32
    return %arg0, %arg1 : i32, i32
  }
  func.func @transform_1(%arg0: i32, %arg1: i32) -> (i32, i32) {
    %c0_i32 = arith.constant 0 : i32
    %c0_i32_0 = arith.constant 0 : i32
    return %arg0, %c0_i32 : i32, i32
  }
  func.func @transform_2(%arg0: i32, %arg1: i32) -> (i32, i32) {
    %c0_i32 = arith.constant 0 : i32
    %c0_i32_0 = arith.constant 0 : i32
    return %arg0, %c0_i32 : i32, i32
  }
}

</mosaic_0001>

<llo_original>
// kernel: tpu_custom_call.1
$region0: #{tpu_custom_call.1}
  #allocation0 [shape = 'u32[]', space=smem, size = 0x4, offset = 0x4, fixed_abs, tag = 'smem constant byte address 0x4 - core index']
  #allocation1 [shape = 'u32[144,128]{1,0:T(1,128)}', space=vmem, size = 0x12000, scoped, tag = 'internal scratch']
  #allocation2 [shape = 'f32[8,1]{1,0:T(8,128)}', space=vmem, size = 0x1000, scoped, tag = 'scratch operand']
  #allocation3 [shape = 'f32[8,1]{1,0:T(8,128)}', space=vmem, size = 0x1000, scoped, tag = 'scratch operand']
  #allocation4 [shape = 'f32[8,1]{1,0:T(8,128)}', space=vmem, size = 0x1000, scoped, tag = 'scratch operand']
  %s0 = inlined_call_operand.vmem [shape: f32[16,32], index: 0, kind: input, shape index: {}]
  %s1 = inlined_call_operand.vmem [shape: s32[16,1], index: 1, kind: input, shape index: {}]
  %s2 = inlined_call_operand.vmem [shape: f32[16,1], index: 2, kind: output, shape index: {}]
  %s3 = sld [smem:[#allocation0]]
  $region49: #{tpu_custom_call.1} parent=0
    _
  %s5 = ssub.s32 1, %s3
  %s6 = scalar_select 0, %s5, %s3
  loop: start=0, step=1, limit=4
  $region2: #{tpu_custom_call.1} parent=0 // loop_pre_header
    _
  $region3: #{tpu_custom_call.1} parent=0 // loop_header
    %s8 = sphi 0, %s12
    %p9 = scmp.ge.s32.totalorder %s8, 4
    %s15 = sphi 0, %s27
    %s16 = sphi 0, %s23
    %s17 = sphi 0, %s15
    %s18 = sphi 0, %s16
    %s19 = sphi 0, %s17
    %s20 = sphi 0, %s18
    %s32 = sphi 0, %s34
    %s35 = sphi 0, %s32
    %s36 = sphi 0, %s35
    %s52 = sphi 0, %s36
    %s58 = sphi 0, %s60
    %s61 = sphi 0, %s58
    %s62 = sphi 0, %s61
    %s78 = sphi 0, %s62
    %s84 = sphi 0, %s86
    %s87 = sphi 0, %s84
    %s88 = sphi 0, %s87
    %s104 = sphi 0, %s88
  $region4: #{tpu_custom_call.1} parent=0 // loop_header_branch
    %11 = sbr.rel (%p9) target = $region8
  $region5: #{tpu_custom_call.1} parent=0 // loop_body
    %s13 = ssub.s32 %s8, 1
    %s14 = ssub.s32 %s8, 2
    %s21 = sadd.s32 1, %s16
    %p22 = scmp.ge.s32.totalorder %s21, 1
    %s23 = scalar_select %p22, 0, %s21
    %s24 = sadd.s32 1, %s15
    %s25 = scalar_select %p22, %s24, %s15
    %p26 = scmp.ge.s32.totalorder %s25, 2
    %s27 = scalar_select %p26, 0, %s25
    %s28 = ssub.s32 %s15, %s27
    %s29 = ssub.s32 %s16, %s23
    %s30 = sor.u32 %s28, %s29
    %p31 = scmp.eq.s32.totalorder %s30, 0
    %s33 = sadd.s32 %s32, 1
    %s34 = scalar_select %p31, %s32, %s33
    %p37 = pneg %p31
    %p38 = scmp.eq.s32.totalorder %s8, 1
    %p39 = por %p37, %p38
    %p40 = scmp.ne.s32.totalorder %s32, %s35
    %p41 = scmp.eq.s32.totalorder %s8, 0
    %p42 = por %p40, %p41
    %p43 = scmp.ne.s32.totalorder %s32, %s35
    %p44 = scmp.eq.s32.totalorder %s13, 1
    %p45 = por %p43, %p44
    %p46 = scmp.ne.s32.totalorder %s35, %s36
    %p47 = scmp.eq.s32.totalorder %s13, 0
    %p48 = por %p46, %p47
    %p49 = scmp.ne.s32.totalorder %s35, %s36
    %p50 = scmp.eq.s32.totalorder %s14, 1
    %p51 = por %p49, %p50
    %p53 = scmp.ne.s32.totalorder %s36, %s52
    %p54 = scmp.eq.s32.totalorder %s14, 0
    %p55 = por %p53, %p54
    %s56 = ssub.s32 %s15, %s27
    %p57 = scmp.eq.s32.totalorder %s56, 0
    %s59 = sadd.s32 %s58, 1
    %s60 = scalar_select %p57, %s58, %s59
    %p63 = pneg %p57
    %p64 = scmp.eq.s32.totalorder %s8, 1
    %p65 = por %p63, %p64
    %p66 = scmp.ne.s32.totalorder %s58, %s61
    %p67 = scmp.eq.s32.totalorder %s8, 0
    %p68 = por %p66, %p67
    %p69 = scmp.ne.s32.totalorder %s58, %s61
    %p70 = scmp.eq.s32.totalorder %s13, 1
    %p71 = por %p69, %p70
    %p72 = scmp.ne.s32.totalorder %s61, %s62
    %p73 = scmp.eq.s32.totalorder %s13, 0
    %p74 = por %p72, %p73
    %p75 = scmp.ne.s32.totalorder %s61, %s62
    %p76 = scmp.eq.s32.totalorder %s14, 1
    %p77 = por %p75, %p76
    %p79 = scmp.ne.s32.totalorder %s62, %s78
    %p80 = scmp.eq.s32.totalorder %s14, 0
    %p81 = por %p79, %p80
    %s82 = ssub.s32 %s15, %s27
    %p83 = scmp.eq.s32.totalorder %s82, 0
    %s85 = sadd.s32 %s84, 1
    %s86 = scalar_select %p83, %s84, %s85
    %p89 = pneg %p83
    %p90 = scmp.eq.s32.totalorder %s8, 1
    %p91 = por %p89, %p90
    %p92 = scmp.ne.s32.totalorder %s84, %s87
    %p93 = scmp.eq.s32.totalorder %s8, 0
    %p94 = por %p92, %p93
    %p95 = scmp.ne.s32.totalorder %s84, %s87
    %p96 = scmp.eq.s32.totalorder %s13, 1
    %p97 = por %p95, %p96
    %p98 = scmp.ne.s32.totalorder %s87, %s88
    %p99 = scmp.eq.s32.totalorder %s13, 0
    %p100 = por %p98, %p99
    %p101 = scmp.ne.s32.totalorder %s87, %s88
    %p102 = scmp.eq.s32.totalorder %s14, 1
    %p103 = por %p101, %p102
    %p105 = scmp.ne.s32.totalorder %s88, %s104
    %p106 = scmp.eq.s32.totalorder %s14, 0
    %p107 = por %p105, %p106
    %p108 = scmp.le.s32.totalorder 1, %s8
    %p109 = scmp.lt.s32.totalorder %s8, 3
    %p110 = pnand %p108, %p109
    %p111 = pneg %p110
    // Predicated region
    $region9: #{tpu_custom_call.1} parent=5 // pred_check
      _
    $region10: #{tpu_custom_call.1} parent=5 // pred_check_branch
      %113 = sbr.rel (%p110) target = $region12
    $region11: #{tpu_custom_call.1} parent=5 // pred_region
      %s114 = ssub.s32 %s8, 1
    $region12: #{tpu_custom_call.1} parent=5 // pred_fallthru
      _
    %p115 = scmp.lt.s32.totalorder %s8, 2
    // Predicated region
    $region13: #{tpu_custom_call.1} parent=5 // pred_check
      %p116 = pneg %p115
    $region14: #{tpu_custom_call.1} parent=5 // pred_check_branch
      %118 = sbr.rel (%p116) target = $region16
    $region15: #{tpu_custom_call.1} parent=5 // pred_region
      // Predicated region
      $region17: #{tpu_custom_call.1} parent=15 // pred_check
        %p119 = pneg %p42
      $region18: #{tpu_custom_call.1} parent=15 // pred_check_branch
        %121 = sbr.rel (%p119) target = $region20
      $region19: #{tpu_custom_call.1} parent=15 // pred_region
        %p122 = scmp.lt.s32.totalorder %s15, 1
        %s123 = scalar_select %p122, %s15, 1
        %p124 = scmp.lt.s32.totalorder %s16, 0
        %s125 = scalar_select %p124, %s16, 0
        %s126 = sadd.s32 %s125, %s123
        %s127 = smul.addr %s126, 8
        %s128 = scalar_lea.vmem %s0, %s127
      $region20: #{tpu_custom_call.1} parent=15 // pred_fallthru
        _
      // Predicated region
      $region21: #{tpu_custom_call.1} parent=15 // pred_check
        %p129 = pneg %p68
      $region22: #{tpu_custom_call.1} parent=15 // pred_check_branch
        %131 = sbr.rel (%p129) target = $region24
      $region23: #{tpu_custom_call.1} parent=15 // pred_region
        %p132 = scmp.lt.s32.totalorder %s15, 1
        %s133 = scalar_select %p132, %s15, 1
        %s134 = smul.addr %s133, 8
        %s135 = scalar_lea.vmem %s1, %s134
      $region24: #{tpu_custom_call.1} parent=15 // pred_fallthru
        _
    $region16: #{tpu_custom_call.1} parent=5 // pred_fallthru
      _
    %p136 = scmp.le.s32.totalorder 1, %s8
    %p137 = scmp.lt.s32.totalorder %s8, 3
    %p138 = pnand %p136, %p137
    %p139 = pneg %p138
    // Predicated region
    $region25: #{tpu_custom_call.1} parent=5 // pred_check
      _
    $region26: #{tpu_custom_call.1} parent=5 // pred_check_branch
      %141 = sbr.rel (%p138) target = $region28
    $region27: #{tpu_custom_call.1} parent=5 // pred_region
      %s142 = ssub.s32 %s8, 1
      %p143 = scmp.lt.s32.totalorder %s17, 1
      %s144 = scalar_select %p143, %s17, 1
      %p145 = scmp.lt.s32.totalorder %s18, 0
      %s146 = scalar_select %p145, %s18, 0
      %s147 = sadd.s32 %s146, %s144
      %s148 = smul.addr %s147, 8
      %s149 = scalar_lea.vmem %s0, %s148
      %p150 = pneg %p48
      %p151 = pneg %p45
      %p152 = scmp.lt.s32.totalorder %s17, 1
      %s153 = scalar_select %p152, %s17, 1
      %s154 = smul.addr %s153, 8
      %s155 = scalar_lea.vmem %s1, %s154
      %p156 = pneg %p74
      %p157 = pneg %p71
      %p158 = pneg %p100
      %p159 = pneg %p97
      %p160 = scmp.lt.s32.totalorder %s17, 1
      %s161 = scalar_select %p160, %s17, 1
      %s162 = smul.addr %s161, 8
      %s163 = scalar_lea.vmem %s2, %s162
      %p164 = scmp.lt.s32.totalorder %s17, 1
      %s165 = scalar_select %p164, %s17, 1
      %p166 = scmp.lt.s32.totalorder %s18, 0
      %s167 = scalar_select %p166, %s18, 0
      %s168 = sadd.s32 %s167, %s165
      %s169 = smul.addr %s168, 8
      %s170 = scalar_lea.vmem %s0, %s169
      %p171 = scmp.lt.s32.totalorder %s17, 1
      %s172 = scalar_select %p171, %s17, 1
      %s173 = smul.addr %s172, 8
      %s174 = scalar_lea.vmem %s1, %s173
      %p175 = scmp.lt.s32.totalorder %s17, 1
      %s176 = scalar_select %p175, %s17, 1
      %s177 = smul.addr %s176, 8
      %s178 = scalar_lea.vmem %s2, %s177
      %p179 = scmp.eq.s32.totalorder %s18, 0
      // Predicated region
      $region29: #{tpu_custom_call.1} parent=27 // pred_check
        %p180 = pneg %p179
      $region30: #{tpu_custom_call.1} parent=27 // pred_check_branch
        %182 = sbr.rel (%p180) target = $region32
      $region31: #{tpu_custom_call.1} parent=27 // pred_region
        %vm183 = vcmask 7168
        %184 = vst.msk [vmem:[#allocation2] sm:$0xff] %vm183, -inf
        %185 = vst.msk [vmem:[#allocation3] sm:$0xff] %vm183, 0.0
        %186 = vst.msk [vmem:[#allocation4] sm:$0xff] %vm183, 0.0
      $region32: #{tpu_custom_call.1} parent=27 // pred_fallthru
        _
      %v187 = vld [vmem:[%s170] sm:$0xff]
      %v188 = vld [vmem:[%s174] sm:$0xff]
      %s189 = smul.u32 %s18, 32
      %v190 = vlaneseq
      %v191 = vand.u32 %v190, 127
      %v192 = vstv %s189
      %v193 = vadd.s32 %v192, %v191
      %v194 = vld [vmem:[#allocation4] sm:$0xff]
      %195 = vset.pattern.permute.xlu0 0
      %196 = vperm.xlu0 %195, %v188
      %v197 = vpop.permute.xlu0 %196
      %vm198 = vcmp.eq.s32.totalorder %v193, %v197
      %v199 = vsel %vm198, %v187, 0.0
      %vm200 = vcmask 261120
      %v201 = vsel %vm200, %v199, 0.0
      %202 = vadd.xlane.f32.xlu0 %v201
      %v203 = vpop.xlane.xlu0 %202
      %v204 = vadd.f32 %v194, %v203
      %vm205 = vcmask 7168
      %206 = vst.msk [vmem:[#allocation4] sm:$0xff] %vm205, %v204
      %v207 = vsel %vm200, %v187, -inf
      %208 = vmax.xlane.f32.xlu0 %v207
      %v209 = vpop.xlane.xlu0 %208
      %v210 = vld [vmem:[#allocation2] sm:$0xff]
      %v211 = vmax.f32 %v210, %v209
      %v212 = vsub.f32 %v210, %v211
      %v213 = vmul.f32 %v212, 1.442695
      %v214 = vpow.pop %v213
      %216 = vset.pattern.permute.xlu0 0
      %217 = vperm.xlu0 %216, %v211
      %v218 = vpop.permute.xlu0 %217
      %v220 = vsub.f32 %v187, %v218
      %v221 = vld [vmem:[#allocation3] sm:$0xff]
      %v222 = vmul.f32 %v214, %v221
      %v223 = vmul.f32 %v220, 1.442695
      %v224 = vpow.pop %v223
      %v225 = vsel %vm200, %v224, 0.0
      %226 = vadd.xlane.f32.xlu0 %v225
      %v227 = vpop.xlane.xlu0 %226
      %v228 = vadd.f32 %v222, %v227
      %229 = vst.msk [vmem:[#allocation3] sm:$0xff] %vm205, %v228
      %230 = vst.msk [vmem:[#allocation2] sm:$0xff] %vm205, %v211
      // Predicated region
      $region33: #{tpu_custom_call.1} parent=27 // pred_check
        %p231 = pneg %p179
      $region34: #{tpu_custom_call.1} parent=27 // pred_check_branch
        %233 = sbr.rel (%p231) target = $region36
      $region35: #{tpu_custom_call.1} parent=27 // pred_region
        %v234 = vld [vmem:[#allocation2] sm:$0xff]
        %v235 = vld [vmem:[#allocation3] sm:$0xff]
        %v236 = vlog2.pop %v235
        %v237 = vmul.f32 %v236, 0.6931472
        %v238 = vadd.f32 %v234, %v237
        %v239 = vld [vmem:[#allocation4] sm:$0xff]
        %v240 = vsub.f32 %v238, %v239
        %s241 = smul.u32 %s17, 8
        %v242 = vlaneseq
        %v243 = vshrl.u32 %v242, 7
        %v244 = vstv %s241
        %v245 = vadd.s32 %v244, %v243
        %vm246 = vcmp.lt.s32.totalorder %v245, 16
        %vm247 = vcmp.ne.s32.totalorder %v188, 4294967196
        %vm248 = vmand %vm246, %vm247
        %v249 = vsel %vm248, %v240, 0.0
        %250 = vst.msk [vmem:[%s178] sm:$0xff] %vm205, %v249
      $region36: #{tpu_custom_call.1} parent=27 // pred_fallthru
        _
      %p251 = scmp.lt.s32.totalorder %s17, 1
      %s252 = scalar_select %p251, %s17, 1
      %s253 = smul.addr %s252, 8
      %s254 = scalar_lea.vmem %s2, %s253
      // Predicated region
      $region37: #{tpu_custom_call.1} parent=27 // pred_check
        %p255 = pneg %p97
      $region38: #{tpu_custom_call.1} parent=27 // pred_check_branch
        %257 = sbr.rel (%p255) target = $region40
      $region39: #{tpu_custom_call.1} parent=27 // pred_region
        _
      $region40: #{tpu_custom_call.1} parent=27 // pred_fallthru
        _
    $region28: #{tpu_custom_call.1} parent=5 // pred_fallthru
      _
    %p258 = scmp.le.s32.totalorder 2, %s8
    // Predicated region
    $region41: #{tpu_custom_call.1} parent=5 // pred_check
      %p259 = pneg %p258
    $region42: #{tpu_custom_call.1} parent=5 // pred_check_branch
      %261 = sbr.rel (%p259) target = $region44
    $region43: #{tpu_custom_call.1} parent=5 // pred_region
      %s262 = ssub.s32 %s8, 2
      // Predicated region
      $region45: #{tpu_custom_call.1} parent=43 // pred_check
        %p263 = pneg %p103
      $region46: #{tpu_custom_call.1} parent=43 // pred_check_branch
        %265 = sbr.rel (%p263) target = $region48
      $region47: #{tpu_custom_call.1} parent=43 // pred_region
        %p266 = scmp.lt.s32.totalorder %s19, 1
        %s267 = scalar_select %p266, %s19, 1
        %s268 = smul.addr %s267, 8
        %s269 = scalar_lea.vmem %s2, %s268
      $region48: #{tpu_custom_call.1} parent=43 // pred_fallthru
        _
    $region44: #{tpu_custom_call.1} parent=5 // pred_fallthru
      _
  $region6: #{tpu_custom_call.1} parent=0 // loop_footer
    %s12 = sadd.s32 1, %s8
  $region7: #{tpu_custom_call.1} parent=0 // loop_footer_branch
    %7 = sbr.rel target = $region3
  $region8: #{tpu_custom_call.1} parent=0 // loop_exit
    _

</llo_original>
